<compile_context>
chip_gen: v7x
topology: tpu7x:2x2x1
jax: 0.10.0
libtpu: 0.0.40
codegen_flags: <defaults>
</compile_context>

<pallas_src>
import functools

import jax
import jax.numpy as jnp
from jax.experimental import pallas as pl
from jax.experimental.pallas import tpu as pltpu

_LANE = 128
_TARGET_F32_BLOCK_BYTES = 1 * 1024 * 1024     # ~1 MiB f32 working set per x block


# --------------------------------------------------------------------------- #
# Kernels
# --------------------------------------------------------------------------- #
def _split3_bf16(v):
    """Split an f32 array into 3 bf16 pieces whose sum reconstructs ~f32 precision.

    Manual 3-pass decomposition (== Precision.HIGH accuracy): each piece feeds a
    native bf16 MXU pass with f32 accumulation, instead of the ~6 passes that an
    f32 HIGHEST matmul lowers to.
    """
    hi = v.astype(jnp.bfloat16)
    r = v - hi.astype(jnp.float32)
    mid = r.astype(jnp.bfloat16)
    lo = (r - mid.astype(jnp.float32)).astype(jnp.bfloat16)
    return hi, mid, lo


def _seg_mean(v, seg_bf16):
    """Per-segment mean of v (f32, (tm, L)), broadcast back to every lane of its
    C-lane segment, via the block-diagonal 1/C matrix (exact in bf16 since C | 128).
    Three bf16 MXU passes, f32 accumulation."""
    hi, mid, lo = _split3_bf16(v)
    out = jnp.dot(hi, seg_bf16, preferred_element_type=jnp.float32)
    out = out + jnp.dot(mid, seg_bf16, preferred_element_type=jnp.float32)
    out = out + jnp.dot(lo, seg_bf16, preferred_element_type=jnp.float32)
    return out


def _ln_lanedense_kernel(x_ref, w_ref, b_ref, s_ref, o_ref, *, eps):
    """Block = (tm, L) with L = G*C = 128 lane-dense; stats per C-lane segment."""
    x = x_ref[...].astype(jnp.float32)                    # (tm, L)
    s = s_ref[...]                                        # (L, L) bf16 block-diag, 1/C
    mu = _seg_mean(x, s)                                  # E[x], broadcast per segment
    xc = x - mu                                           # centered (no cancellation)
    var = jnp.maximum(_seg_mean(xc * xc, s), 0.0)         # unbiased=False variance
    inv = jax.lax.rsqrt(var + eps)
    w = w_ref[...].astype(jnp.float32)                    # (1, L)
    b = b_ref[...].astype(jnp.float32)                    # (1, L)
    o_ref[...] = (xc * inv * w + b).astype(o_ref.dtype)


def _ln_rowwise_kernel(x_ref, w_ref, b_ref, o_ref, *, eps):
    """Fallback when C cannot be lane-folded (C >= 128 or 128 % C != 0).
    Block last dim equals the full feature dim, so the logical reduction never
    touches layout padding lanes."""
    x = x_ref[...].astype(jnp.float32)                    # (tm, C)
    c_inv = 1.0 / x.shape[-1]
    mu = jnp.sum(x, axis=-1, keepdims=True) * c_inv
    xc = x - mu
    var = jnp.sum(xc * xc, axis=-1, keepdims=True) * c_inv
    inv = jax.lax.rsqrt(var + eps)
    w = w_ref[...].astype(jnp.float32)
    b = b_ref[...].astype(jnp.float32)
    o_ref[...] = (xc * inv * w + b).astype(o_ref.dtype)


# --------------------------------------------------------------------------- #
# Wrapper
# --------------------------------------------------------------------------- #
def _pick_tm(n_rows, lane_width):
    # Size from the f32 working set (kernel computes in f32), independent of the
    # input itemsize, so bf16 inputs don't double on-chip temporaries.
    tm = max(16, _TARGET_F32_BLOCK_BYTES // (lane_width * 4))
    if tm >= n_rows:
        return int(n_rows)            # single full-extent block (always layout-legal)
    # Keep >= 2 reasonably balanced blocks so megacore parts can split the grid,
    # without shrinking tiles below 256 rows (per-grid-step overhead ~0.35 us).
    tm = min(tm, max(256, pl.cdiv(n_rows, 2)))
    # Sublane alignment: multiple of 16 covers both f32 (8/vreg) and bf16 (16/vreg).
    return int(max(16, (tm // 16) * 16))


def _vmem_limit_bytes():
    # Generation-aware scoped-VMEM limit: 48 MiB on v5e/v6e (128 MiB physical),
    # 40 MiB on v7x (64 MiB physical).  Safe fallback if the query is unavailable.
    cap = 64 * 1024 * 1024
    try:
        cap = int(pltpu.get_tpu_info().vmem_capacity_bytes)
    except Exception:
        pass
    return int(min(48 * 1024 * 1024, (cap * 5) // 8))


def withbias_layernorm(x, weight, bias, *, eps=1e-5):
    """x: (..., C); weight/bias: (C,). Matches WithBias_LayerNorm.forward."""
    orig_shape = x.shape
    C = orig_shape[-1]
    x2 = x.reshape(-1, C)
    N = x2.shape[0]

    compiler_params = pltpu.CompilerParams(
        dimension_semantics=("parallel",),
        vmem_limit_bytes=_vmem_limit_bytes(),
    )

    fold = (C < _LANE) and (_LANE % C == 0)
    if fold:
        # Lane-dense path: fold G consecutive rows into the 128-lane dimension so
        # every block is (tm, 128) -> full-lane vld/vst, no lane padding in HBM.
        G = _LANE // C
        L = G * C                                  # == 128
        n_rows = pl.cdiv(N, G)
        pad = n_rows * G - N                       # <= G-1 rows, usually 0
        if pad:
            x2 = jnp.pad(x2, ((0, pad), (0, 0)))   # tiny tail pad only (not pad-to-tm)
        xk = x2.reshape(n_rows, L)                 # metadata reshape (row-major)
        wk = jnp.tile(jnp.reshape(weight, (1, C)), (1, G))     # (1, L)
        bk = jnp.tile(jnp.reshape(bias, (1, C)), (1, G))       # (1, L)
        seg_id = jnp.arange(L, dtype=jnp.int32) // C
        # Block-diagonal segment-mean matrix; 1/C is exact in bf16 (C | 128 => pow2).
        seg = ((seg_id[:, None] == seg_id[None, :]).astype(jnp.float32)
               * (1.0 / C)).astype(jnp.bfloat16)   # (L, L)

        tm = _pick_tm(n_rows, L)
        grid = (pl.cdiv(n_rows, tm),)              # partial boundary block handled by Pallas
        out = pl.pallas_call(
            functools.partial(_ln_lanedense_kernel, eps=eps),
            out_shape=jax.ShapeDtypeStruct((n_rows, L), x.dtype),
            grid_spec=pltpu.PrefetchScalarGridSpec(
                num_scalar_prefetch=0,
                grid=grid,
                in_specs=[pl.BlockSpec((tm, L), lambda i: (i, 0)),
                          pl.BlockSpec((1, L), lambda i: (0, 0)),
                          pl.BlockSpec((1, L), lambda i: (0, 0)),
                          pl.BlockSpec((L, L), lambda i: (0, 0))],
                out_specs=pl.BlockSpec((tm, L), lambda i: (i, 0)),
            ),
            compiler_params=compiler_params,
        )(xk, wk, bk, seg)
        out = out.reshape(n_rows * G, C)
        if pad:
            out = out[:N]
        return out.reshape(orig_shape)

    # Row-wise fallback (C >= 128 or 128 % C != 0).  Block last dim == full C.
    # TODO(synk): for C < 128 with 128 % C != 0 one could pad C up to the next
    # divisor of 128 wrapper-side to regain the lane-dense path.
    tm = _pick_tm(N, C)
    grid = (pl.cdiv(N, tm),)
    out = pl.pallas_call(
        functools.partial(_ln_rowwise_kernel, eps=eps),
        out_shape=jax.ShapeDtypeStruct((N, C), x.dtype),
        grid_spec=pltpu.PrefetchScalarGridSpec(
            num_scalar_prefetch=0,
            grid=grid,
            in_specs=[pl.BlockSpec((tm, C), lambda i: (i, 0)),
                      pl.BlockSpec((1, C), lambda i: (0, 0)),
                      pl.BlockSpec((1, C), lambda i: (0, 0))],
            out_specs=pl.BlockSpec((tm, C), lambda i: (i, 0)),
        ),
        compiler_params=compiler_params,
    )(x2, jnp.reshape(weight, (1, C)), jnp.reshape(bias, (1, C)))
    return out.reshape(orig_shape)


# --------------------------------------------------------------------------- #
# Demo / self-check
# --------------------------------------------------------------------------- #
if __name__ == "__main__":
    key = jax.random.PRNGKey(0)
    # Small shape consistent with the module: tokens x features, C = normalized_shape
    B, S, C = 2, 64, 32
    x = jax.random.normal(key, (B, S, C), dtype=jnp.float32)

    # Deterministic parameter init matching nn.Parameter(ones / zeros)
    weight = jnp.ones((C,), dtype=jnp.float32)
    bias = jnp.zeros((C,), dtype=jnp.float32)

    y = jax.block_until_ready(withbias_layernorm(x, weight, bias))

    # Reference check in plain JAX (same semantics as the torch forward)
    mu = jnp.mean(x, axis=-1, keepdims=True)
    var = jnp.mean((x - mu) ** 2, axis=-1, keepdims=True)
    ref = (x - mu) / jnp.sqrt(var + 1e-5) * weight + bias
    assert jnp.allclose(y, ref, atol=1e-5, rtol=1e-5), float(jnp.max(jnp.abs(y - ref)))

    print("KERNEL_OK")
</pallas_src>

<mosaic_0001>
module attributes {stable_mosaic.version = 11 : i64} {
  func.func @_ln_lanedense_kernel(%arg0: i32, %arg1: memref<32x128xf32, #tpu.memory_space<vmem>>, %arg2: memref<1x128xf32, #tpu.memory_space<vmem>>, %arg3: memref<1x128xf32, #tpu.memory_space<vmem>>, %arg4: memref<128x128xbf16, #tpu.memory_space<vmem>>, %arg5: memref<32x128xf32, #tpu.memory_space<vmem>>) attributes {dimension_semantics = [#tpu.dimension_semantics<parallel>], iteration_bounds = array<i64: 1>, scalar_prefetch = 0 : i64, scratch_operands = 0 : i64, tpu.core_type = #tpu.core_type<tc>, window_params = [{transform_indices = @transform_0, window_bounds = array<i64: 32, 128>}, {pipeline_mode = #tpu.pipeline_mode<synchronous>, transform_indices = @transform_1, window_bounds = array<i64: 1, 128>}, {pipeline_mode = #tpu.pipeline_mode<synchronous>, transform_indices = @transform_2, window_bounds = array<i64: 1, 128>}, {pipeline_mode = #tpu.pipeline_mode<synchronous>, transform_indices = @transform_3, window_bounds = array<i64: 128, 128>}, {transform_indices = @transform_4, window_bounds = array<i64: 32, 128>}]} {
    %c0 = arith.constant 0 : index
    %c0_0 = arith.constant 0 : index
    %0 = vector.load %arg1[%c0, %c0_0] : memref<32x128xf32, #tpu.memory_space<vmem>>, vector<32x128xf32>
    %c0_1 = arith.constant 0 : index
    %c0_2 = arith.constant 0 : index
    %1 = vector.load %arg4[%c0_1, %c0_2] : memref<128x128xbf16, #tpu.memory_space<vmem>>, vector<128x128xbf16>
    %2 = arith.truncf %0 : vector<32x128xf32> to vector<32x128xbf16>
    %3 = arith.extf %2 : vector<32x128xbf16> to vector<32x128xf32>
    %4 = arith.subf %0, %3 : vector<32x128xf32>
    %5 = arith.truncf %4 : vector<32x128xf32> to vector<32x128xbf16>
    %6 = arith.extf %5 : vector<32x128xbf16> to vector<32x128xf32>
    %7 = arith.subf %4, %6 : vector<32x128xf32>
    %8 = arith.truncf %7 : vector<32x128xf32> to vector<32x128xbf16>
    %cst = arith.constant dense<0.000000e+00> : vector<32x128xf32>
    %9 = tpu.matmul %2, %1, %cst {dimension_numbers = #tpu.dot_dimension_numbers<[1], [0], [0], [1], [0, 0, 1, 1], [], []>} : vector<32x128xbf16>, vector<128x128xbf16>, vector<32x128xf32> -> vector<32x128xf32>
    %cst_3 = arith.constant dense<0.000000e+00> : vector<32x128xf32>
    %10 = tpu.matmul %5, %1, %cst_3 {dimension_numbers = #tpu.dot_dimension_numbers<[1], [0], [0], [1], [0, 0, 1, 1], [], []>} : vector<32x128xbf16>, vector<128x128xbf16>, vector<32x128xf32> -> vector<32x128xf32>
    %11 = arith.addf %9, %10 : vector<32x128xf32>
    %cst_4 = arith.constant dense<0.000000e+00> : vector<32x128xf32>
    %12 = tpu.matmul %8, %1, %cst_4 {dimension_numbers = #tpu.dot_dimension_numbers<[1], [0], [0], [1], [0, 0, 1, 1], [], []>} : vector<32x128xbf16>, vector<128x128xbf16>, vector<32x128xf32> -> vector<32x128xf32>
    %13 = arith.addf %11, %12 : vector<32x128xf32>
    %14 = arith.subf %0, %13 : vector<32x128xf32>
    %15 = arith.mulf %14, %14 : vector<32x128xf32>
    %16 = arith.truncf %15 : vector<32x128xf32> to vector<32x128xbf16>
    %17 = arith.extf %16 : vector<32x128xbf16> to vector<32x128xf32>
    %18 = arith.subf %15, %17 : vector<32x128xf32>
    %19 = arith.truncf %18 : vector<32x128xf32> to vector<32x128xbf16>
    %20 = arith.extf %19 : vector<32x128xbf16> to vector<32x128xf32>
    %21 = arith.subf %18, %20 : vector<32x128xf32>
    %22 = arith.truncf %21 : vector<32x128xf32> to vector<32x128xbf16>
    %cst_5 = arith.constant dense<0.000000e+00> : vector<32x128xf32>
    %23 = tpu.matmul %16, %1, %cst_5 {dimension_numbers = #tpu.dot_dimension_numbers<[1], [0], [0], [1], [0, 0, 1, 1], [], []>} : vector<32x128xbf16>, vector<128x128xbf16>, vector<32x128xf32> -> vector<32x128xf32>
    %cst_6 = arith.constant dense<0.000000e+00> : vector<32x128xf32>
    %24 = tpu.matmul %19, %1, %cst_6 {dimension_numbers = #tpu.dot_dimension_numbers<[1], [0], [0], [1], [0, 0, 1, 1], [], []>} : vector<32x128xbf16>, vector<128x128xbf16>, vector<32x128xf32> -> vector<32x128xf32>
    %25 = arith.addf %23, %24 : vector<32x128xf32>
    %cst_7 = arith.constant dense<0.000000e+00> : vector<32x128xf32>
    %26 = tpu.matmul %22, %1, %cst_7 {dimension_numbers = #tpu.dot_dimension_numbers<[1], [0], [0], [1], [0, 0, 1, 1], [], []>} : vector<32x128xbf16>, vector<128x128xbf16>, vector<32x128xf32> -> vector<32x128xf32>
    %27 = arith.addf %25, %26 : vector<32x128xf32>
    %cst_8 = arith.constant 0.000000e+00 : f32
    %28 = vector.broadcast %cst_8 : f32 to vector<32x128xf32>
    %29 = arith.maximumf %27, %28 : vector<32x128xf32>
    %cst_9 = arith.constant 9.99999974E-6 : f32
    %30 = vector.broadcast %cst_9 : f32 to vector<32x128xf32>
    %31 = arith.addf %29, %30 : vector<32x128xf32>
    %32 = math.rsqrt %31 : vector<32x128xf32>
    %c0_10 = arith.constant 0 : index
    %c0_11 = arith.constant 0 : index
    %33 = vector.load %arg2[%c0_10, %c0_11] : memref<1x128xf32, #tpu.memory_space<vmem>>, vector<1x128xf32>
    %c0_12 = arith.constant 0 : index
    %c0_13 = arith.constant 0 : index
    %34 = vector.load %arg3[%c0_12, %c0_13] : memref<1x128xf32, #tpu.memory_space<vmem>>, vector<1x128xf32>
    %35 = arith.mulf %14, %32 : vector<32x128xf32>
    %36 = vector.broadcast %33 : vector<1x128xf32> to vector<32x128xf32>
    %37 = arith.mulf %35, %36 : vector<32x128xf32>
    %38 = vector.broadcast %34 : vector<1x128xf32> to vector<32x128xf32>
    %39 = arith.addf %37, %38 : vector<32x128xf32>
    %c0_14 = arith.constant 0 : index
    %c0_15 = arith.constant 0 : index
    %40 = vector.load %arg5[%c0_14, %c0_15] : memref<32x128xf32, #tpu.memory_space<vmem>>, vector<32x128xf32>
    tpu.vector_store %arg5[%c0_14, %c0_15], %39 {strides = array<i32>} : memref<32x128xf32, #tpu.memory_space<vmem>>, vector<32x128xf32>,
    return
  }
  func.func @transform_0(%arg0: i32) -> (i32, i32) {
    %c0_i32 = arith.constant 0 : i32
    %c0_i32_0 = arith.constant 0 : i32
    return %arg0, %c0_i32 : i32, i32
  }
  func.func @transform_1(%arg0: i32) -> (i32, i32) {
    %c0_i32 = arith.constant 0 : i32
    %c0_i32_0 = arith.constant 0 : i32
    %c0_i32_1 = arith.constant 0 : i32
    return %c0_i32, %c0_i32_0 : i32, i32
  }
  func.func @transform_2(%arg0: i32) -> (i32, i32) {
    %c0_i32 = arith.constant 0 : i32
    %c0_i32_0 = arith.constant 0 : i32
    %c0_i32_1 = arith.constant 0 : i32
    return %c0_i32, %c0_i32_0 : i32, i32
  }
  func.func @transform_3(%arg0: i32) -> (i32, i32) {
    %c0_i32 = arith.constant 0 : i32
    %c0_i32_0 = arith.constant 0 : i32
    %c0_i32_1 = arith.constant 0 : i32
    return %c0_i32, %c0_i32_0 : i32, i32
  }
  func.func @transform_4(%arg0: i32) -> (i32, i32) {
    %c0_i32 = arith.constant 0 : i32
    %c0_i32_0 = arith.constant 0 : i32
    return %arg0, %c0_i32 : i32, i32
  }
}

</mosaic_0001>

<llo_original>
// kernel: tpu_custom_call.1
$region0: #{tpu_custom_call.1}
  #allocation0 [shape = 'u32[]', space=smem, size = 0x4, offset = 0x4, fixed_abs, tag = 'smem constant byte address 0x4 - core index']
  #allocation1 [shape = 'u32[144,128]{1,0:T(1,128)}', space=vmem, size = 0x12000, scoped, tag = 'internal scratch']
  %s0 = inlined_call_operand.hbm [shape: f32[32,128], index: 0, kind: input, shape index: {}]
  %s1 = inlined_call_operand.vmem [shape: f32[1,128], index: 1, kind: input, shape index: {}]
  %s2 = inlined_call_operand.vmem [shape: f32[1,128], index: 2, kind: input, shape index: {}]
  %s3 = inlined_call_operand.hbm [shape: bf16[128,128], index: 3, kind: input, shape index: {}]
  %s4 = inlined_call_operand.hbm [shape: f32[32,128], index: 4, kind: output, shape index: {}]
  %s5 = sld [smem:[#allocation0]]
  $region34: #{tpu_custom_call.1} parent=0
    _
  %s7 = ssub.s32 1, %s5
  %s8 = scalar_select 0, %s7, %s5
  $region1: #{tpu_custom_call.1} parent=0
    #allocation2 [shape = 'u8[16384]{0}', space=vmem, size = 0x4000, scoped, tag = 'input window, operand 0, single buffered']
    #allocation3 [shape = 's32[1]{0}', space=sflag, size = 0x4, scoped, tag = 'scoped memory for tpu_custom_call.1']
    #allocation4 [shape = 's32[1]{0}', space=sflag, size = 0x4, scoped, tag = 'scoped memory for tpu_custom_call.1']
    #allocation5 [shape = 'u8[32768]{0}', space=vmem, size = 0x8000, scoped, tag = 'input window, operand 3, single buffered']
    #allocation6 [shape = 's32[1]{0}', space=sflag, size = 0x4, scoped, tag = 'scoped memory for tpu_custom_call.1']
    #allocation7 [shape = 'u8[16384]{0}', space=vmem, size = 0x4000, scoped, tag = 'output window, operand 0, single buffered']
    %9 = vsyncpa [#allocation3], 0
    %10 = vsyncpa [#allocation6], 0
    %11 = vsyncpa [#allocation4], 0
    // Predicated region
    $region2: #{tpu_custom_call.1} parent=1 // pred_check
      _
    $region3: #{tpu_custom_call.1} parent=1 // pred_check_branch
      %13 = sbr.rel (0) target = $region5
    $region4: #{tpu_custom_call.1} parent=1 // pred_region
      %s15 = ssub.s32 512, 512
      %16 = vsyncadd [#allocation3], %s15
      %s17 = sshll.u32 [#allocation2], 4
      %s18 = int_to_ptr.vmem [resolvable:$true] %s17
      %23 = dma.hbm_to_vmem [thread:$0]  %s0, 512, %s18, [#allocation3], 128, 128, 8
    $region5: #{tpu_custom_call.1} parent=1 // pred_fallthru
      _
    // Predicated region
    $region6: #{tpu_custom_call.1} parent=1 // pred_check
      _
    $region7: #{tpu_custom_call.1} parent=1 // pred_check_branch
      %25 = sbr.rel (0) target = $region9
    $region8: #{tpu_custom_call.1} parent=1 // pred_region
      _
    $region9: #{tpu_custom_call.1} parent=1 // pred_fallthru
      _
    // Predicated region
    $region10: #{tpu_custom_call.1} parent=1 // pred_check
      _
    $region11: #{tpu_custom_call.1} parent=1 // pred_check_branch
      %27 = sbr.rel (0) target = $region13
    $region12: #{tpu_custom_call.1} parent=1 // pred_region
      _
    $region13: #{tpu_custom_call.1} parent=1 // pred_fallthru
      _
    // Predicated region
    $region14: #{tpu_custom_call.1} parent=1 // pred_check
      _
    $region15: #{tpu_custom_call.1} parent=1 // pred_check_branch
      %29 = sbr.rel (0) target = $region17
    $region16: #{tpu_custom_call.1} parent=1 // pred_region
      %s31 = ssub.s32 1024, 1024
      %32 = vsyncadd [#allocation6], %s31
      %s33 = sshll.u32 [#allocation5], 4
      %s34 = int_to_ptr.vmem [resolvable:$true] %s33
      %39 = dma.hbm_to_vmem [thread:$0]  %s3, 1024, %s34, [#allocation6], 64, 64, 4
    $region17: #{tpu_custom_call.1} parent=1 // pred_fallthru
      _
    // Predicated region
    $region18: #{tpu_custom_call.1} parent=1 // pred_check
      _
    $region19: #{tpu_custom_call.1} parent=1 // pred_check_branch
      %41 = sbr.rel (0) target = $region21
    $region20: #{tpu_custom_call.1} parent=1 // pred_region
      %42 = dma.done [#allocation3], 512
    $region21: #{tpu_custom_call.1} parent=1 // pred_fallthru
      _
    // Predicated region
    $region22: #{tpu_custom_call.1} parent=1 // pred_check
      _
    $region23: #{tpu_custom_call.1} parent=1 // pred_check_branch
      %44 = sbr.rel (0) target = $region25
    $region24: #{tpu_custom_call.1} parent=1 // pred_region
      %45 = dma.done [#allocation6], 1024
    $region25: #{tpu_custom_call.1} parent=1 // pred_fallthru
      _
    %v47 = vld [vmem:[#allocation2] sm:$0xff]
    %v48 = vld [vmem:[#allocation2 + $0x8] sm:$0xff]
    %v49 = vld [vmem:[#allocation2 + $0x10] sm:$0xff]
    %v50 = vld [vmem:[#allocation2 + $0x18] sm:$0xff]
    %v51 = vld [vmem:[#allocation5] sm:$0xf]
    %v52 = vld [vmem:[#allocation5 + $0x4] sm:$0xf]
    %v53 = vld [vmem:[#allocation5 + $0x8] sm:$0xf]
    %v54 = vld [vmem:[#allocation5 + $0xc] sm:$0xf]
    %v55 = vld [vmem:[#allocation5 + $0x10] sm:$0xf]
    %v56 = vld [vmem:[#allocation5 + $0x14] sm:$0xf]
    %v57 = vld [vmem:[#allocation5 + $0x18] sm:$0xf]
    %v58 = vld [vmem:[#allocation5 + $0x1c] sm:$0xf]
    %v59 = vld [vmem:[#allocation5 + $0x20] sm:$0xf]
    %v60 = vld [vmem:[#allocation5 + $0x24] sm:$0xf]
    %v61 = vld [vmem:[#allocation5 + $0x28] sm:$0xf]
    %v62 = vld [vmem:[#allocation5 + $0x2c] sm:$0xf]
    %v63 = vld [vmem:[#allocation5 + $0x30] sm:$0xf]
    %v64 = vld [vmem:[#allocation5 + $0x34] sm:$0xf]
    %v65 = vld [vmem:[#allocation5 + $0x38] sm:$0xf]
    %v66 = vld [vmem:[#allocation5 + $0x3c] sm:$0xf]
    %v67 = vpack.c.bf16 %v48, %v47
    %v68 = vpack.c.bf16 %v50, %v49
    %v69 = vunpack.c.l.bf16 %v67
    %v70 = vunpack.c.h.bf16 %v67
    %v71 = vunpack.c.l.bf16 %v68
    %v72 = vunpack.c.h.bf16 %v68
    %v73 = vsub.f32 %v47, %v69
    %v74 = vsub.f32 %v48, %v70
    %v75 = vsub.f32 %v49, %v71
    %v76 = vsub.f32 %v50, %v72
    %v77 = vpack.c.bf16 %v74, %v73
    %v78 = vpack.c.bf16 %v76, %v75
    %v79 = vunpack.c.l.bf16 %v77
    %v80 = vunpack.c.h.bf16 %v77
    %v81 = vunpack.c.l.bf16 %v78
    %v82 = vunpack.c.h.bf16 %v78
    %v83 = vsub.f32 %v73, %v79
    %v84 = vsub.f32 %v74, %v80
    %v85 = vsub.f32 %v75, %v81
    %v86 = vsub.f32 %v76, %v82
    %v87 = vpack.c.bf16 %v84, %v83
    %v88 = vpack.c.bf16 %v86, %v85
    %v105 = vunpack.c.l.b16 %v51
    %v106 = vunpack.c.l.b16 %v52
    %v107 = vunpack.c.l.b16 %v53
    %v108 = vunpack.c.l.b16 %v54
    %v109 = vunpack.c.l.b16 %v55
    %v110 = vunpack.c.l.b16 %v56
    %v111 = vunpack.c.l.b16 %v57
    %v112 = vunpack.c.l.b16 %v58
    %v113 = vunpack.c.l.b16 %v59
    %v114 = vunpack.c.l.b16 %v60
    %v115 = vunpack.c.l.b16 %v61
    %v116 = vunpack.c.l.b16 %v62
    %v117 = vunpack.c.l.b16 %v63
    %v118 = vunpack.c.l.b16 %v64
    %v119 = vunpack.c.l.b16 %v65
    %v120 = vunpack.c.l.b16 %v66
    %v121 = vpack.c.b16 %v106, %v105
    %v122 = vpack.c.b16 %v108, %v107
    %v123 = vpack.c.b16 %v110, %v109
    %v124 = vpack.c.b16 %v112, %v111
    %v125 = vpack.c.b16 %v114, %v113
    %v126 = vpack.c.b16 %v116, %v115
    %v127 = vpack.c.b16 %v118, %v117
    %v128 = vpack.c.b16 %v120, %v119
    %137 = vmatprep.subr.bf16.mxu0 0
    %138 = vmatpush1.bf16.msra.mxu0 %v121
    %139 = vmatprep.subr.bf16.mxu0 0
    %140 = vmatpush1.bf16.msra.mxu0 %v122
    %141 = vmatprep.subr.bf16.mxu0 0
    %142 = vmatpush1.bf16.msra.mxu0 %v123
    %143 = vmatprep.subr.bf16.mxu0 0
    %144 = vmatpush1.bf16.msra.mxu0 %v124
    %145 = vmatprep.subr.bf16.mxu0 0
    %146 = vmatpush1.bf16.msra.mxu0 %v125
    %147 = vmatprep.subr.bf16.mxu0 0
    %148 = vmatpush1.bf16.msra.mxu0 %v126
    %149 = vmatprep.subr.bf16.mxu0 0
    %150 = vmatpush1.bf16.msra.mxu0 %v127
    %151 = vmatprep.subr.bf16.mxu0 0
    %152 = vmatpush1.bf16.msra.mxu0 %v128
    %153 = vmatprep.subr.bf16.mxu0 0
    %154 = vmatpush1.bf16.msra.mxu0 0
    %155 = vmatprep.subr.bf16.mxu0 0
    %156 = vmatpush1.bf16.msra.mxu0 0
    %157 = vmatprep.subr.bf16.mxu0 0
    %158 = vmatpush1.bf16.msra.mxu0 0
    %159 = vmatprep.subr.bf16.mxu0 0
    %160 = vmatpush1.bf16.msra.mxu0 0
    %161 = vmatprep.subr.bf16.mxu0 0
    %162 = vmatpush1.bf16.msra.mxu0 0
    %163 = vmatprep.subr.bf16.mxu0 0
    %164 = vmatpush1.bf16.msra.mxu0 0
    %165 = vmatprep.subr.bf16.mxu0 0
    %166 = vmatpush1.bf16.msra.mxu0 0
    %167 = vmatprep.subr.bf16.mxu0 0
    %168 = vmatpush1.bf16.msra.mxu0 0
    %169 = vmatprep.mubr.bf16.mxu0 0
    %170 = vmatmul.mubr.bf16.gmra.mrb[0].mxu0 %v77
    %v171 = vpop.f32.mrb[0].mxu0
    %v172 = vadd.f32 0.0, %v171
    %v173 = vpop.f32.mrb[0].mxu0
    %v174 = vpop.f32.mrb[0].mxu0
    %v175 = vadd.f32 0.0, %v174
    %v176 = vpop.f32.mrb[0].mxu0
    %177 = vmatprep.mubr.bf16.mxu0 0
    %178 = vmatmul.mubr.bf16.gmra.mrb[0].mxu0 %v78
    %v179 = vpop.f32.mrb[0].mxu0
    %v180 = vadd.f32 0.0, %v179
    %v181 = vpop.f32.mrb[0].mxu0
    %v182 = vpop.f32.mrb[0].mxu0
    %v183 = vadd.f32 0.0, %v182
    %v184 = vpop.f32.mrb[0].mxu0
    %185 = vdwg.mxu0
    %186 = vmatprep.subr.bf16.mxu0 0
    %187 = vmatpush1.bf16.msra.mxu0 %v121
    %188 = vmatprep.subr.bf16.mxu0 0
    %189 = vmatpush1.bf16.msra.mxu0 %v122
    %190 = vmatprep.subr.bf16.mxu0 0
    %191 = vmatpush1.bf16.msra.mxu0 %v123
    %192 = vmatprep.subr.bf16.mxu0 0
    %193 = vmatpush1.bf16.msra.mxu0 %v124
    %194 = vmatprep.subr.bf16.mxu0 0
    %195 = vmatpush1.bf16.msra.mxu0 %v125
    %196 = vmatprep.subr.bf16.mxu0 0
    %197 = vmatpush1.bf16.msra.mxu0 %v126
    %198 = vmatprep.subr.bf16.mxu0 0
    %199 = vmatpush1.bf16.msra.mxu0 %v127
    %200 = vmatprep.subr.bf16.mxu0 0
    %201 = vmatpush1.bf16.msra.mxu0 %v128
    %202 = vmatprep.subr.bf16.mxu0 0
    %203 = vmatpush1.bf16.msra.mxu0 0
    %204 = vmatprep.subr.bf16.mxu0 0
    %205 = vmatpush1.bf16.msra.mxu0 0
    %206 = vmatprep.subr.bf16.mxu0 0
    %207 = vmatpush1.bf16.msra.mxu0 0
    %208 = vmatprep.subr.bf16.mxu0 0
    %209 = vmatpush1.bf16.msra.mxu0 0
    %210 = vmatprep.subr.bf16.mxu0 0
    %211 = vmatpush1.bf16.msra.mxu0 0
    %212 = vmatprep.subr.bf16.mxu0 0
    %213 = vmatpush1.bf16.msra.mxu0 0
    %214 = vmatprep.subr.bf16.mxu0 0
    %215 = vmatpush1.bf16.msra.mxu0 0
    %216 = vmatprep.subr.bf16.mxu0 0
    %217 = vmatpush1.bf16.msra.mxu0 0
    %218 = vmatprep.mubr.bf16.mxu0 0
    %219 = vmatmul.mubr.bf16.gmra.mrb[0].mxu0 %v67
    %v220 = vpop.f32.mrb[0].mxu0
    %v221 = vadd.f32 %v172, %v220
    %v222 = vpop.f32.mrb[0].mxu0
    %v223 = vpop.f32.mrb[0].mxu0
    %v224 = vadd.f32 %v175, %v223
    %v225 = vpop.f32.mrb[0].mxu0
    %226 = vmatprep.mubr.bf16.mxu0 0
    %227 = vmatmul.mubr.bf16.gmra.mrb[0].mxu0 %v68
    %v228 = vpop.f32.mrb[0].mxu0
    %v229 = vadd.f32 %v180, %v228
    %v230 = vpop.f32.mrb[0].mxu0
    %v231 = vpop.f32.mrb[0].mxu0
    %v232 = vadd.f32 %v183, %v231
    %v233 = vpop.f32.mrb[0].mxu0
    %234 = vdwg.mxu0
    %235 = vmatprep.subr.bf16.mxu0 0
    %236 = vmatpush1.bf16.msra.mxu0 %v121
    %237 = vmatprep.subr.bf16.mxu0 0
    %238 = vmatpush1.bf16.msra.mxu0 %v122
    %239 = vmatprep.subr.bf16.mxu0 0
    %240 = vmatpush1.bf16.msra.mxu0 %v123
    %241 = vmatprep.subr.bf16.mxu0 0
    %242 = vmatpush1.bf16.msra.mxu0 %v124
    %243 = vmatprep.subr.bf16.mxu0 0
    %244 = vmatpush1.bf16.msra.mxu0 %v125
    %245 = vmatprep.subr.bf16.mxu0 0
    %246 = vmatpush1.bf16.msra.mxu0 %v126
    %247 = vmatprep.subr.bf16.mxu0 0
    %248 = vmatpush1.bf16.msra.mxu0 %v127
    %249 = vmatprep.subr.bf16.mxu0 0
    %250 = vmatpush1.bf16.msra.mxu0 %v128
    %251 = vmatprep.subr.bf16.mxu0 0
    %252 = vmatpush1.bf16.msra.mxu0 0
    %253 = vmatprep.subr.bf16.mxu0 0
    %254 = vmatpush1.bf16.msra.mxu0 0
    %255 = vmatprep.subr.bf16.mxu0 0
    %256 = vmatpush1.bf16.msra.mxu0 0
    %257 = vmatprep.subr.bf16.mxu0 0
    %258 = vmatpush1.bf16.msra.mxu0 0
    %259 = vmatprep.subr.bf16.mxu0 0
    %260 = vmatpush1.bf16.msra.mxu0 0
    %261 = vmatprep.subr.bf16.mxu0 0
    %262 = vmatpush1.bf16.msra.mxu0 0
    %263 = vmatprep.subr.bf16.mxu0 0
    %264 = vmatpush1.bf16.msra.mxu0 0
    %265 = vmatprep.subr.bf16.mxu0 0
    %266 = vmatpush1.bf16.msra.mxu0 0
    %267 = vmatprep.mubr.bf16.mxu0 0
    %268 = vmatmul.mubr.bf16.gmra.mrb[0].mxu0 %v87
    %v269 = vpop.f32.mrb[0].mxu0
    %v270 = vadd.f32 0.0, %v269
    %v271 = vpop.f32.mrb[0].mxu0
    %v272 = vpop.f32.mrb[0].mxu0
    %v273 = vadd.f32 0.0, %v272
    %v274 = vpop.f32.mrb[0].mxu0
    %275 = vmatprep.mubr.bf16.mxu0 0
    %276 = vmatmul.mubr.bf16.gmra.mrb[0].mxu0 %v88
    %v277 = vpop.f32.mrb[0].mxu0
    %v278 = vadd.f32 0.0, %v277
    %v279 = vpop.f32.mrb[0].mxu0
    %v280 = vpop.f32.mrb[0].mxu0
    %v281 = vadd.f32 0.0, %v280
    %v282 = vpop.f32.mrb[0].mxu0
    %283 = vdwg.mxu0
    %v284 = vadd.f32 %v221, %v270
    %v285 = vadd.f32 %v224, %v273
    %v286 = vadd.f32 %v229, %v278
    %v287 = vadd.f32 %v232, %v281
    %v288 = vsub.f32 %v47, %v284
    %v289 = vsub.f32 %v48, %v285
    %v290 = vsub.f32 %v49, %v286
    %v291 = vsub.f32 %v50, %v287
    %v292 = vmul.f32 %v288, %v288
    %v293 = vmul.f32 %v289, %v289
    %v294 = vmul.f32 %v290, %v290
    %v295 = vmul.f32 %v291, %v291
    %v296 = vpack.c.bf16 %v293, %v292
    %v297 = vpack.c.bf16 %v295, %v294
    %v298 = vunpack.c.l.bf16 %v296
    %v299 = vunpack.c.h.bf16 %v296
    %v300 = vunpack.c.l.bf16 %v297
    %v301 = vunpack.c.h.bf16 %v297
    %v302 = vsub.f32 %v292, %v298
    %v303 = vsub.f32 %v293, %v299
    %v304 = vsub.f32 %v294, %v300
    %v305 = vsub.f32 %v295, %v301
    %v306 = vpack.c.bf16 %v303, %v302
    %v307 = vpack.c.bf16 %v305, %v304
    %v308 = vunpack.c.l.bf16 %v306
    %v309 = vunpack.c.h.bf16 %v306
    %v310 = vunpack.c.l.bf16 %v307
    %v311 = vunpack.c.h.bf16 %v307
    %v312 = vsub.f32 %v302, %v308
    %v313 = vsub.f32 %v303, %v309
    %v314 = vsub.f32 %v304, %v310
    %v315 = vsub.f32 %v305, %v311
    %v316 = vpack.c.bf16 %v313, %v312
    %v317 = vpack.c.bf16 %v315, %v314
    %318 = vmatprep.subr.bf16.mxu0 0
    %319 = vmatpush1.bf16.msra.mxu0 %v121
    %320 = vmatprep.subr.bf16.mxu0 0
    %321 = vmatpush1.bf16.msra.mxu0 %v122
    %322 = vmatprep.subr.bf16.mxu0 0
    %323 = vmatpush1.bf16.msra.mxu0 %v123
    %324 = vmatprep.subr.bf16.mxu0 0
    %325 = vmatpush1.bf16.msra.mxu0 %v124
    %326 = vmatprep.subr.bf16.mxu0 0
    %327 = vmatpush1.bf16.msra.mxu0 %v125
    %328 = vmatprep.subr.bf16.mxu0 0
    %329 = vmatpush1.bf16.msra.mxu0 %v126
    %330 = vmatprep.subr.bf16.mxu0 0
    %331 = vmatpush1.bf16.msra.mxu0 %v127
    %332 = vmatprep.subr.bf16.mxu0 0
    %333 = vmatpush1.bf16.msra.mxu0 %v128
    %334 = vmatprep.subr.bf16.mxu0 0
    %335 = vmatpush1.bf16.msra.mxu0 0
    %336 = vmatprep.subr.bf16.mxu0 0
    %337 = vmatpush1.bf16.msra.mxu0 0
    %338 = vmatprep.subr.bf16.mxu0 0
    %339 = vmatpush1.bf16.msra.mxu0 0
    %340 = vmatprep.subr.bf16.mxu0 0
    %341 = vmatpush1.bf16.msra.mxu0 0
    %342 = vmatprep.subr.bf16.mxu0 0
    %343 = vmatpush1.bf16.msra.mxu0 0
    %344 = vmatprep.subr.bf16.mxu0 0
    %345 = vmatpush1.bf16.msra.mxu0 0
    %346 = vmatprep.subr.bf16.mxu0 0
    %347 = vmatpush1.bf16.msra.mxu0 0
    %348 = vmatprep.subr.bf16.mxu0 0
    %349 = vmatpush1.bf16.msra.mxu0 0
    %350 = vmatprep.mubr.bf16.mxu0 0
    %351 = vmatmul.mubr.bf16.gmra.mrb[0].mxu0 %v306
    %v352 = vpop.f32.mrb[0].mxu0
    %v353 = vadd.f32 0.0, %v352
    %v354 = vpop.f32.mrb[0].mxu0
    %v355 = vpop.f32.mrb[0].mxu0
    %v356 = vadd.f32 0.0, %v355
    %v357 = vpop.f32.mrb[0].mxu0
    %358 = vmatprep.mubr.bf16.mxu0 0
    %359 = vmatmul.mubr.bf16.gmra.mrb[0].mxu0 %v307
    %v360 = vpop.f32.mrb[0].mxu0
    %v361 = vadd.f32 0.0, %v360
    %v362 = vpop.f32.mrb[0].mxu0
    %v363 = vpop.f32.mrb[0].mxu0
    %v364 = vadd.f32 0.0, %v363
    %v365 = vpop.f32.mrb[0].mxu0
    %366 = vdwg.mxu0
    %367 = vmatprep.subr.bf16.mxu0 0
    %368 = vmatpush1.bf16.msra.mxu0 %v121
    %369 = vmatprep.subr.bf16.mxu0 0
    %370 = vmatpush1.bf16.msra.mxu0 %v122
    %371 = vmatprep.subr.bf16.mxu0 0
    %372 = vmatpush1.bf16.msra.mxu0 %v123
    %373 = vmatprep.subr.bf16.mxu0 0
    %374 = vmatpush1.bf16.msra.mxu0 %v124
    %375 = vmatprep.subr.bf16.mxu0 0
    %376 = vmatpush1.bf16.msra.mxu0 %v125
    %377 = vmatprep.subr.bf16.mxu0 0
    %378 = vmatpush1.bf16.msra.mxu0 %v126
    %379 = vmatprep.subr.bf16.mxu0 0
    %380 = vmatpush1.bf16.msra.mxu0 %v127
    %381 = vmatprep.subr.bf16.mxu0 0
    %382 = vmatpush1.bf16.msra.mxu0 %v128
    %383 = vmatprep.subr.bf16.mxu0 0
    %384 = vmatpush1.bf16.msra.mxu0 0
    %385 = vmatprep.subr.bf16.mxu0 0
    %386 = vmatpush1.bf16.msra.mxu0 0
    %387 = vmatprep.subr.bf16.mxu0 0
    %388 = vmatpush1.bf16.msra.mxu0 0
    %389 = vmatprep.subr.bf16.mxu0 0
    %390 = vmatpush1.bf16.msra.mxu0 0
    %391 = vmatprep.subr.bf16.mxu0 0
    %392 = vmatpush1.bf16.msra.mxu0 0
    %393 = vmatprep.subr.bf16.mxu0 0
    %394 = vmatpush1.bf16.msra.mxu0 0
    %395 = vmatprep.subr.bf16.mxu0 0
    %396 = vmatpush1.bf16.msra.mxu0 0
    %397 = vmatprep.subr.bf16.mxu0 0
    %398 = vmatpush1.bf16.msra.mxu0 0
    %399 = vmatprep.mubr.bf16.mxu0 0
    %400 = vmatmul.mubr.bf16.gmra.mrb[0].mxu0 %v296
    %v401 = vpop.f32.mrb[0].mxu0
    %v402 = vadd.f32 %v353, %v401
    %v403 = vpop.f32.mrb[0].mxu0
    %v404 = vpop.f32.mrb[0].mxu0
    %v405 = vadd.f32 %v356, %v404
    %v406 = vpop.f32.mrb[0].mxu0
    %407 = vmatprep.mubr.bf16.mxu0 0
    %408 = vmatmul.mubr.bf16.gmra.mrb[0].mxu0 %v297
    %v409 = vpop.f32.mrb[0].mxu0
    %v410 = vadd.f32 %v361, %v409
    %v411 = vpop.f32.mrb[0].mxu0
    %v412 = vpop.f32.mrb[0].mxu0
    %v413 = vadd.f32 %v364, %v412
    %v414 = vpop.f32.mrb[0].mxu0
    %415 = vdwg.mxu0
    %416 = vmatprep.subr.bf16.mxu0 0
    %417 = vmatpush1.bf16.msra.mxu0 %v121
    %418 = vmatprep.subr.bf16.mxu0 0
    %419 = vmatpush1.bf16.msra.mxu0 %v122
    %420 = vmatprep.subr.bf16.mxu0 0
    %421 = vmatpush1.bf16.msra.mxu0 %v123
    %422 = vmatprep.subr.bf16.mxu0 0
    %423 = vmatpush1.bf16.msra.mxu0 %v124
    %424 = vmatprep.subr.bf16.mxu0 0
    %425 = vmatpush1.bf16.msra.mxu0 %v125
    %426 = vmatprep.subr.bf16.mxu0 0
    %427 = vmatpush1.bf16.msra.mxu0 %v126
    %428 = vmatprep.subr.bf16.mxu0 0
    %429 = vmatpush1.bf16.msra.mxu0 %v127
    %430 = vmatprep.subr.bf16.mxu0 0
    %431 = vmatpush1.bf16.msra.mxu0 %v128
    %432 = vmatprep.subr.bf16.mxu0 0
    %433 = vmatpush1.bf16.msra.mxu0 0
    %434 = vmatprep.subr.bf16.mxu0 0
    %435 = vmatpush1.bf16.msra.mxu0 0
    %436 = vmatprep.subr.bf16.mxu0 0
    %437 = vmatpush1.bf16.msra.mxu0 0
    %438 = vmatprep.subr.bf16.mxu0 0
    %439 = vmatpush1.bf16.msra.mxu0 0
    %440 = vmatprep.subr.bf16.mxu0 0
    %441 = vmatpush1.bf16.msra.mxu0 0
    %442 = vmatprep.subr.bf16.mxu0 0
    %443 = vmatpush1.bf16.msra.mxu0 0
    %444 = vmatprep.subr.bf16.mxu0 0
    %445 = vmatpush1.bf16.msra.mxu0 0
    %446 = vmatprep.subr.bf16.mxu0 0
    %447 = vmatpush1.bf16.msra.mxu0 0
    %448 = vmatprep.mubr.bf16.mxu0 0
    %449 = vmatmul.mubr.bf16.gmra.mrb[0].mxu0 %v316
    %v450 = vpop.f32.mrb[0].mxu0
    %v451 = vadd.f32 0.0, %v450
    %v452 = vpop.f32.mrb[0].mxu0
    %v453 = vpop.f32.mrb[0].mxu0
    %v454 = vadd.f32 0.0, %v453
    %v455 = vpop.f32.mrb[0].mxu0
    %456 = vmatprep.mubr.bf16.mxu0 0
    %457 = vmatmul.mubr.bf16.gmra.mrb[0].mxu0 %v317
    %v458 = vpop.f32.mrb[0].mxu0
    %v459 = vadd.f32 0.0, %v458
    %v460 = vpop.f32.mrb[0].mxu0
    %v461 = vpop.f32.mrb[0].mxu0
    %v462 = vadd.f32 0.0, %v461
    %v463 = vpop.f32.mrb[0].mxu0
    %464 = vdwg.mxu0
    %v465 = vadd.f32 %v402, %v451
    %v466 = vadd.f32 %v405, %v454
    %v467 = vadd.f32 %v410, %v459
    %v468 = vadd.f32 %v413, %v462
    %v469 = vmax.f32 %v465, 0.0
    %v470 = vmax.f32 %v466, 0.0
    %v471 = vmax.f32 %v467, 0.0
    %v472 = vmax.f32 %v468, 0.0
    %v473 = vadd.f32 %v469, 1e-05
    %v474 = vadd.f32 %v470, 1e-05
    %v475 = vadd.f32 %v471, 1e-05
    %v476 = vadd.f32 %v472, 1e-05
    %v477 = vrsqrt.pop %v473
    %v478 = vrsqrt.pop %v474
    %v479 = vrsqrt.pop %v475
    %v480 = vrsqrt.pop %v476
    %v481 = vld [vmem:[%s1] sm:$0x1]
    %v482 = vld [vmem:[%s2] sm:$0x1]
    %v483 = vmul.f32 %v288, %v477
    %v484 = vmul.f32 %v289, %v478
    %v485 = vmul.f32 %v290, %v479
    %v486 = vmul.f32 %v291, %v480
    %v488 = vlaneseq
    %v489 = vshrl.u32 %v488, 7
    %v490 = vsub.s32 0, %v489
    %v491 = vrot.slane %v481, %v490
    %v493 = vmul.f32 %v483, %v491
    %v494 = vmul.f32 %v484, %v491
    %v495 = vmul.f32 %v485, %v491
    %v496 = vmul.f32 %v486, %v491
    %v498 = vlaneseq
    %v499 = vshrl.u32 %v498, 7
    %v500 = vsub.s32 0, %v499
    %v501 = vrot.slane %v482, %v500
    %v503 = vadd.f32 %v493, %v501
    %v504 = vadd.f32 %v494, %v501
    %v505 = vadd.f32 %v495, %v501
    %v506 = vadd.f32 %v496, %v501
    %507 = vst [vmem:[#allocation7] sm:$0xff] %v503
    %508 = vst [vmem:[#allocation7 + $0x8] sm:$0xff] %v504
    %509 = vst [vmem:[#allocation7 + $0x10] sm:$0xff] %v505
    %510 = vst [vmem:[#allocation7 + $0x18] sm:$0xff] %v506
    // Predicated region
    $region26: #{tpu_custom_call.1} parent=1 // pred_check
      _
    $region27: #{tpu_custom_call.1} parent=1 // pred_check_branch
      %512 = sbr.rel (0) target = $region29
    $region28: #{tpu_custom_call.1} parent=1 // pred_region
      %s514 = ssub.s32 512, 512
      %515 = vsyncadd [#allocation4], %s514
      %s516 = sshll.u32 [#allocation7], 4
      %s517 = int_to_ptr.vmem [resolvable:$true] %s516
      %522 = dma.vmem_to_hbm [thread:$0]  %s517, 512, %s4, [#allocation4], 128, 128, 8
    $region29: #{tpu_custom_call.1} parent=1 // pred_fallthru
      _
    // Predicated region
    $region30: #{tpu_custom_call.1} parent=1 // pred_check
      _
    $region31: #{tpu_custom_call.1} parent=1 // pred_check_branch
      %524 = sbr.rel (0) target = $region33
    $region32: #{tpu_custom_call.1} parent=1 // pred_region
      %525 = dma.done [#allocation4], 512
    $region33: #{tpu_custom_call.1} parent=1 // pred_fallthru
      _
    %526 = vsyncpa [#allocation3], 1
    %527 = vsyncpa [#allocation6], 1
    %528 = vsyncpa [#allocation4], 1

</llo_original>
